<compile_context>
chip_gen: v7x
topology: tpu7x:2x2x1
jax: 0.10.0
libtpu: 0.0.40
codegen_flags: <defaults>
</compile_context>

<pallas_src>
import functools
import math

import jax
import jax.numpy as jnp
from jax.experimental import pallas as pl
from jax.experimental.pallas import tpu as pltpu


# ----------------------------------------------------------------------------
# Helpers
# ----------------------------------------------------------------------------

def _round_up(x, m):
    return (x + m - 1) // m * m


def _pad2d(a, rows, cols):
    r, c = a.shape
    if r == rows and c == cols:
        return a
    return jnp.pad(a, ((0, rows - r), (0, cols - c)))


def _vmem_capacity_bytes():
    """Physical VMEM per TensorCore; conservative fallback if query fails."""
    try:
        info = pltpu.get_tpu_info()
        cap = getattr(info, "vmem_capacity_bytes", None)
        if cap:
            return int(cap)
    except Exception:
        pass
    return 64 * 1024 * 1024  # v7x-sized conservative default


def _pick_tm(M, tm_max=512, row_mult=16, min_steps=2):
    """Row tile + padded row count. Rows rounded to 16 (bf16 sublane packing);
    prefer >= 2 row grid-steps so v7x's two TensorCores both get work."""
    Mr = _round_up(max(M, 1), row_mult)
    tm = min(tm_max, Mr)
    if Mr // tm < min_steps and Mr >= min_steps * row_mult:
        tm = _round_up(-(-Mr // min_steps), row_mult)
    Mp = _round_up(Mr, tm)
    return tm, Mp


def _pick_tile(dim, preferred, mult=128):
    """Largest multiple of `mult` that divides `dim` and is <= preferred."""
    if dim <= mult or dim % mult:
        return dim
    t = min(preferred, dim)
    t -= t % mult
    while dim % t:
        t -= mult
    return t


# ----------------------------------------------------------------------------
# General tiled linear:  y = x @ w + b  (optional fused ReLU), f32 accumulation
# ----------------------------------------------------------------------------

def _linear_kernel(x_ref, w_ref, b_ref, o_ref, acc_ref, *, relu):
    k = pl.program_id(2)

    @pl.when(k == 0)
    def _():
        acc_ref[...] = jnp.zeros_like(acc_ref)

    # Cast the x tile to the weight (compute) dtype in-kernel: x stays f32 in HBM,
    # the VPU cast is hidden under the matmul.
    acc_ref[...] += jnp.dot(x_ref[...].astype(w_ref.dtype), w_ref[...],
                            preferred_element_type=jnp.float32)

    @pl.when(k == pl.num_programs(2) - 1)
    def _():
        y = acc_ref[...] + b_ref[...]          # f32 epilogue
        if relu:
            y = jnp.maximum(y, 0.0)
        o_ref[...] = y.astype(o_ref.dtype)


def _linear_padded(xp, wp, bp, *, relu, out_dtype, tm, vmem_limit):
    """xp: (Mp, Kp) any dtype, wp: (Kp, Np) compute dtype, bp: (1, Np) f32.
    All dims already padded; Mp % tm == 0, Kp/Np multiples of 128."""
    Mp, Kp = xp.shape
    Kw, Np = wp.shape
    assert Kw == Kp and Mp % tm == 0

    witem = jnp.dtype(wp.dtype).itemsize
    tn = _pick_tile(Np, 512)                       # 256-multiples preferred on v6e/v7x
    tk = _pick_tile(Kp, 1024 if witem < 4 else 512)
    grid = (Mp // tm, Np // tn, Kp // tk)

    flops = 2 * Mp * Kp * Np
    bytes_accessed = (xp.size * xp.dtype.itemsize + wp.size * witem
                      + bp.size * bp.dtype.itemsize
                      + Mp * Np * jnp.dtype(out_dtype).itemsize)

    return pl.pallas_call(
        functools.partial(_linear_kernel, relu=relu),
        out_shape=jax.ShapeDtypeStruct((Mp, Np), out_dtype),
        grid=grid,
        in_specs=[
            pl.BlockSpec((tm, tk), lambda i, j, k: (i, k)),
            pl.BlockSpec((tk, tn), lambda i, j, k: (k, j)),
            pl.BlockSpec((1, tn), lambda i, j, k: (0, j)),
        ],
        out_specs=pl.BlockSpec((tm, tn), lambda i, j, k: (i, j)),
        scratch_shapes=[pltpu.VMEM((tm, tn), jnp.float32)],
        compiler_params=pltpu.CompilerParams(
            dimension_semantics=("parallel", "parallel", "arbitrary"),
            vmem_limit_bytes=int(vmem_limit)),
        cost_estimate=pl.CostEstimate(flops=int(flops), transcendentals=0,
                                      bytes_accessed=int(bytes_accessed)),
    )(xp, wp, bp)


# ----------------------------------------------------------------------------
# Fused MLP kernel: both matmuls + bias + ReLU in one pallas_call
# (hidden activation never leaves VMEM; weights resident across the M grid)
# ----------------------------------------------------------------------------

def _mlp_fused_kernel(x_ref, w1_ref, b1_ref, w2_ref, b2_ref, o_ref, *, relu):
    x = x_ref[...].astype(w1_ref.dtype)            # in-kernel cast (f32 -> compute dtype)
    h = jnp.dot(x, w1_ref[...], preferred_element_type=jnp.float32)
    h = h + b1_ref[...]                            # f32 epilogue
    if relu:
        h = jnp.maximum(h, 0.0)
    y = jnp.dot(h.astype(w2_ref.dtype), w2_ref[...],
                preferred_element_type=jnp.float32)
    y = y + b2_ref[...]
    o_ref[...] = y.astype(o_ref.dtype)


def _mlp_fused_padded(xp, w1p, b1p, w2p, b2p, *, relu, tm, vmem_limit):
    Mp, Kp = xp.shape
    Hp = w1p.shape[1]
    Np = w2p.shape[1]
    assert Mp % tm == 0

    flops = 2 * Mp * (Kp * Hp + Hp * Np)
    bytes_accessed = (xp.size * xp.dtype.itemsize
                      + w1p.size * w1p.dtype.itemsize
                      + w2p.size * w2p.dtype.itemsize
                      + b1p.size * 4 + b2p.size * 4
                      + Mp * Np * 4)

    return pl.pallas_call(
        functools.partial(_mlp_fused_kernel, relu=relu),
        out_shape=jax.ShapeDtypeStruct((Mp, Np), jnp.float32),
        grid=(Mp // tm,),
        in_specs=[
            pl.BlockSpec((tm, Kp), lambda i: (i, 0)),
            pl.BlockSpec((Kp, Hp), lambda i: (0, 0)),   # W1 resident
            pl.BlockSpec((1, Hp), lambda i: (0, 0)),
            pl.BlockSpec((Hp, Np), lambda i: (0, 0)),   # W2 resident
            pl.BlockSpec((1, Np), lambda i: (0, 0)),
        ],
        out_specs=pl.BlockSpec((tm, Np), lambda i: (i, 0)),
        compiler_params=pltpu.CompilerParams(
            dimension_semantics=("parallel",),
            vmem_limit_bytes=int(vmem_limit)),
        cost_estimate=pl.CostEstimate(flops=int(flops), transcendentals=0,
                                      bytes_accessed=int(bytes_accessed)),
    )(xp, w1p, b1p, w2p, b2p)


# ----------------------------------------------------------------------------
# Parameter prep + MLP forward
# (matches PyTorch MLP: FC(in->mid, ReLU, dropout) -> Linear(mid->out))
# ----------------------------------------------------------------------------

def prepare_mlp_params(params, compute_dtype=jnp.bfloat16):
    """One-time pad (features -> multiples of 128) and cast of the weights.
    Done once, outside the forward pass, so no per-call HBM passes over W1/W2."""
    w1, b1, w2, b2 = params['w1'], params['b1'], params['w2'], params['b2']
    in_size, mid_size = w1.shape
    out_size = w2.shape[1]
    Kp = _round_up(in_size, 128)
    Hp = _round_up(mid_size, 128)
    Np = _round_up(out_size, 128)
    cdt = jnp.dtype(compute_dtype)
    return {
        'w1': _pad2d(w1, Kp, Hp).astype(cdt),
        'b1': _pad2d(b1.reshape(1, -1), 1, Hp).astype(jnp.float32),
        'w2': _pad2d(w2, Hp, Np).astype(cdt),
        'b2': _pad2d(b2.reshape(1, -1), 1, Np).astype(jnp.float32),
        'in_size': in_size, 'mid_size': mid_size, 'out_size': out_size,
        'compute_dtype': cdt,
    }


def mlp_forward(prepared, x, *, use_relu=True, force_unfused=False):
    # TODO(synk): training-mode Dropout is not implemented (inference => identity).
    in_size, out_size = prepared['in_size'], prepared['out_size']
    w1p, b1p, w2p, b2p = prepared['w1'], prepared['b1'], prepared['w2'], prepared['b2']
    Kp, Hp = w1p.shape
    Np = w2p.shape[1]
    cdt = prepared['compute_dtype']

    lead = x.shape[:-1]
    M = math.prod(lead) if lead else 1
    x2 = x.reshape(M, in_size)

    tm, Mp = _pick_tm(M, tm_max=512)
    xp = _pad2d(x2, Mp, Kp)                 # f32; cast to compute dtype happens in-kernel

    # Generation-aware VMEM budgets (128 MiB on v5e/v6e, 64 MiB on v7x).
    cap = _vmem_capacity_bytes()
    vmem_limit = min(cap * 3 // 4, 100 * 1024 * 1024)
    fused_budget = min(cap * 55 // 100, 80 * 1024 * 1024)

    # Conservative fused-path VMEM estimate: double-buffered resident weights + biases,
    # double-buffered x/out tiles, plus the f32 hidden temp and its compute-dtype copy.
    wdt = cdt.itemsize
    fused_bytes = (2 * (wdt * (Kp * Hp + Hp * Np) + 4 * (Hp + Np))
                   + 2 * xp.dtype.itemsize * tm * Kp
                   + 2 * 4 * tm * Np
                   + (4 + wdt) * tm * Hp
                   + 4 * tm * Np)

    if not force_unfused and fused_bytes <= fused_budget:
        yp = _mlp_fused_padded(xp, w1p, b1p, w2p, b2p, relu=use_relu,
                               tm=tm, vmem_limit=vmem_limit)
    else:
        # Fallback: two tiled linears. Hidden activation round-trips HBM in the compute
        # dtype (bf16 by default) and is consumed directly (no re-pad/re-cast pass).
        hp = _linear_padded(xp, w1p, b1p, relu=use_relu, out_dtype=cdt,
                            tm=tm, vmem_limit=vmem_limit)
        yp = _linear_padded(hp, w2p, b2p, relu=False, out_dtype=jnp.float32,
                            tm=tm, vmem_limit=vmem_limit)

    y = yp[:M, :out_size]
    return y.reshape(*lead, out_size)


def mlp_reference(params, x, *, use_relu=True, compute_dtype=jnp.float32):
    """Pure-JAX reference mirroring the kernel's dtype strategy (f32 accumulation)."""
    cdt = jnp.dtype(compute_dtype)
    h = jnp.dot(x.astype(cdt), params['w1'].astype(cdt),
                preferred_element_type=jnp.float32) + params['b1']
    if use_relu:
        h = jnp.maximum(h, 0.0)
    y = jnp.dot(h.astype(cdt), params['w2'].astype(cdt),
                preferred_element_type=jnp.float32) + params['b2']
    return y


# ----------------------------------------------------------------------------
# Main
# ----------------------------------------------------------------------------

if __name__ == "__main__":
    B, S = 2, 8                 # batch, sequence (leading dims of x)
    IN, MID, OUT = 32, 64, 32   # in_size, mid_size, out_size

    key = jax.random.PRNGKey(0)
    kx, k1, k2, k3, k4 = jax.random.split(key, 5)

    x = jax.random.normal(kx, (B, S, IN), dtype=jnp.float32)

    bound1 = 1.0 / math.sqrt(IN)
    bound2 = 1.0 / math.sqrt(MID)
    params = {
        'w1': jax.random.uniform(k1, (IN, MID), jnp.float32, -bound1, bound1),
        'b1': jax.random.uniform(k2, (MID,), jnp.float32, -bound1, bound1),
        'w2': jax.random.uniform(k3, (MID, OUT), jnp.float32, -bound2, bound2),
        'b2': jax.random.uniform(k4, (OUT,), jnp.float32, -bound2, bound2),
    }

    # Default (bf16 matmul operands, f32 accumulation/epilogue) and f32 variants.
    prep_bf16 = prepare_mlp_params(params, compute_dtype=jnp.bfloat16)
    prep_f32 = prepare_mlp_params(params, compute_dtype=jnp.float32)

    y_bf16_fused = jax.block_until_ready(mlp_forward(prep_bf16, x))
    y_bf16_tiled = jax.block_until_ready(mlp_forward(prep_bf16, x, force_unfused=True))
    y_f32_fused = jax.block_until_ready(mlp_forward(prep_f32, x))
    y_f32_tiled = jax.block_until_ready(mlp_forward(prep_f32, x, force_unfused=True))

    ref_f32 = mlp_reference(params, x)
    ref_bf16 = mlp_reference(params, x, compute_dtype=jnp.bfloat16)

    for y in (y_bf16_fused, y_bf16_tiled, y_f32_fused, y_f32_tiled):
        assert y.shape == (B, S, OUT)

    assert jnp.allclose(y_f32_fused, ref_f32, atol=2e-3, rtol=2e-3)
    assert jnp.allclose(y_f32_tiled, ref_f32, atol=2e-3, rtol=2e-3)
    assert jnp.allclose(y_bf16_fused, ref_bf16, atol=1e-2, rtol=1e-2)
    assert jnp.allclose(y_bf16_tiled, ref_bf16, atol=1e-2, rtol=1e-2)
    print("KERNEL_OK")
</pallas_src>

<mosaic_0001>
module attributes {stable_mosaic.version = 11 : i64} {
  func.func @_mlp_fused_kernel(%arg0: i32, %arg1: memref<16x128xf32, #tpu.memory_space<vmem>>, %arg2: memref<128x128xbf16, #tpu.memory_space<vmem>>, %arg3: memref<1x128xf32, #tpu.memory_space<vmem>>, %arg4: memref<128x128xbf16, #tpu.memory_space<vmem>>, %arg5: memref<1x128xf32, #tpu.memory_space<vmem>>, %arg6: memref<16x128xf32, #tpu.memory_space<vmem>>) attributes {dimension_semantics = [#tpu.dimension_semantics<parallel>], iteration_bounds = array<i64: 1>, scalar_prefetch = 0 : i64, scratch_operands = 0 : i64, tpu.core_type = #tpu.core_type<tc>, window_params = [{transform_indices = @transform_0, window_bounds = array<i64: 16, 128>}, {pipeline_mode = #tpu.pipeline_mode<synchronous>, transform_indices = @transform_1, window_bounds = array<i64: 128, 128>}, {pipeline_mode = #tpu.pipeline_mode<synchronous>, transform_indices = @transform_2, window_bounds = array<i64: 1, 128>}, {pipeline_mode = #tpu.pipeline_mode<synchronous>, transform_indices = @transform_3, window_bounds = array<i64: 128, 128>}, {pipeline_mode = #tpu.pipeline_mode<synchronous>, transform_indices = @transform_4, window_bounds = array<i64: 1, 128>}, {transform_indices = @transform_5, window_bounds = array<i64: 16, 128>}]} {
    %c0 = arith.constant 0 : index
    %c0_0 = arith.constant 0 : index
    %0 = vector.load %arg1[%c0, %c0_0] : memref<16x128xf32, #tpu.memory_space<vmem>>, vector<16x128xf32>
    %1 = arith.truncf %0 : vector<16x128xf32> to vector<16x128xbf16>
    %c0_1 = arith.constant 0 : index
    %c0_2 = arith.constant 0 : index
    %2 = vector.load %arg2[%c0_1, %c0_2] : memref<128x128xbf16, #tpu.memory_space<vmem>>, vector<128x128xbf16>
    %cst = arith.constant dense<0.000000e+00> : vector<16x128xf32>
    %3 = tpu.matmul %1, %2, %cst {dimension_numbers = #tpu.dot_dimension_numbers<[1], [0], [0], [1], [0, 0, 1, 1], [], []>} : vector<16x128xbf16>, vector<128x128xbf16>, vector<16x128xf32> -> vector<16x128xf32>
    %c0_3 = arith.constant 0 : index
    %c0_4 = arith.constant 0 : index
    %4 = vector.load %arg3[%c0_3, %c0_4] : memref<1x128xf32, #tpu.memory_space<vmem>>, vector<1x128xf32>
    %5 = vector.broadcast %4 : vector<1x128xf32> to vector<16x128xf32>
    %6 = arith.addf %3, %5 : vector<16x128xf32>
    %cst_5 = arith.constant 0.000000e+00 : f32
    %7 = vector.broadcast %cst_5 : f32 to vector<16x128xf32>
    %8 = arith.maximumf %6, %7 : vector<16x128xf32>
    %9 = arith.truncf %8 : vector<16x128xf32> to vector<16x128xbf16>
    %c0_6 = arith.constant 0 : index
    %c0_7 = arith.constant 0 : index
    %10 = vector.load %arg4[%c0_6, %c0_7] : memref<128x128xbf16, #tpu.memory_space<vmem>>, vector<128x128xbf16>
    %cst_8 = arith.constant dense<0.000000e+00> : vector<16x128xf32>
    %11 = tpu.matmul %9, %10, %cst_8 {dimension_numbers = #tpu.dot_dimension_numbers<[1], [0], [0], [1], [0, 0, 1, 1], [], []>} : vector<16x128xbf16>, vector<128x128xbf16>, vector<16x128xf32> -> vector<16x128xf32>
    %c0_9 = arith.constant 0 : index
    %c0_10 = arith.constant 0 : index
    %12 = vector.load %arg5[%c0_9, %c0_10] : memref<1x128xf32, #tpu.memory_space<vmem>>, vector<1x128xf32>
    %13 = vector.broadcast %12 : vector<1x128xf32> to vector<16x128xf32>
    %14 = arith.addf %11, %13 : vector<16x128xf32>
    %c0_11 = arith.constant 0 : index
    %c0_12 = arith.constant 0 : index
    %15 = vector.load %arg6[%c0_11, %c0_12] : memref<16x128xf32, #tpu.memory_space<vmem>>, vector<16x128xf32>
    tpu.vector_store %arg6[%c0_11, %c0_12], %14 {strides = array<i32>} : memref<16x128xf32, #tpu.memory_space<vmem>>, vector<16x128xf32>,
    return
  }
  func.func @transform_0(%arg0: i32) -> (i32, i32) {
    %c0_i32 = arith.constant 0 : i32
    %c0_i32_0 = arith.constant 0 : i32
    return %arg0, %c0_i32 : i32, i32
  }
  func.func @transform_1(%arg0: i32) -> (i32, i32) {
    %c0_i32 = arith.constant 0 : i32
    %c0_i32_0 = arith.constant 0 : i32
    %c0_i32_1 = arith.constant 0 : i32
    return %c0_i32, %c0_i32_0 : i32, i32
  }
  func.func @transform_2(%arg0: i32) -> (i32, i32) {
    %c0_i32 = arith.constant 0 : i32
    %c0_i32_0 = arith.constant 0 : i32
    %c0_i32_1 = arith.constant 0 : i32
    return %c0_i32, %c0_i32_0 : i32, i32
  }
  func.func @transform_3(%arg0: i32) -> (i32, i32) {
    %c0_i32 = arith.constant 0 : i32
    %c0_i32_0 = arith.constant 0 : i32
    %c0_i32_1 = arith.constant 0 : i32
    return %c0_i32, %c0_i32_0 : i32, i32
  }
  func.func @transform_4(%arg0: i32) -> (i32, i32) {
    %c0_i32 = arith.constant 0 : i32
    %c0_i32_0 = arith.constant 0 : i32
    %c0_i32_1 = arith.constant 0 : i32
    return %c0_i32, %c0_i32_0 : i32, i32
  }
  func.func @transform_5(%arg0: i32) -> (i32, i32) {
    %c0_i32 = arith.constant 0 : i32
    %c0_i32_0 = arith.constant 0 : i32
    return %arg0, %c0_i32 : i32, i32
  }
}

</mosaic_0001>

<llo_original>
// kernel: tpu_custom_call.1
$region0: #{tpu_custom_call.1}
  #allocation0 [shape = 'u32[]', space=smem, size = 0x4, offset = 0x4, fixed_abs, tag = 'smem constant byte address 0x4 - core index']
  #allocation1 [shape = 'u32[144,128]{1,0:T(1,128)}', space=vmem, size = 0x12000, scoped, tag = 'internal scratch']
  %s0 = inlined_call_operand.hbm [shape: f32[16,128], index: 0, kind: input, shape index: {}]
  %s1 = inlined_call_operand.hbm [shape: bf16[128,128], index: 1, kind: input, shape index: {}]
  %s2 = inlined_call_operand.vmem [shape: f32[1,128], index: 2, kind: input, shape index: {}]
  %s3 = inlined_call_operand.hbm [shape: bf16[128,128], index: 3, kind: input, shape index: {}]
  %s4 = inlined_call_operand.vmem [shape: f32[1,128], index: 4, kind: input, shape index: {}]
  %s5 = inlined_call_operand.hbm [shape: f32[16,128], index: 5, kind: output, shape index: {}]
  %s6 = sld [smem:[#allocation0]]
  $region42: #{tpu_custom_call.1} parent=0
    _
  %s8 = ssub.s32 1, %s6
  %s9 = scalar_select 0, %s8, %s6
  $region1: #{tpu_custom_call.1} parent=0
    #allocation2 [shape = 'u8[8192]{0}', space=vmem, size = 0x2000, scoped, tag = 'input window, operand 0, single buffered']
    #allocation3 [shape = 's32[1]{0}', space=sflag, size = 0x4, scoped, tag = 'scoped memory for tpu_custom_call.1']
    #allocation4 [shape = 's32[1]{0}', space=sflag, size = 0x4, scoped, tag = 'scoped memory for tpu_custom_call.1']
    #allocation5 [shape = 'u8[32768]{0}', space=vmem, size = 0x8000, scoped, tag = 'input window, operand 1, single buffered']
    #allocation6 [shape = 's32[1]{0}', space=sflag, size = 0x4, scoped, tag = 'scoped memory for tpu_custom_call.1']
    #allocation7 [shape = 'u8[32768]{0}', space=vmem, size = 0x8000, scoped, tag = 'input window, operand 3, single buffered']
    #allocation8 [shape = 'u8[8192]{0}', space=vmem, size = 0x2000, scoped, tag = 'output window, operand 0, single buffered']
    %10 = vsyncpa [#allocation3], 0
    %11 = vsyncpa [#allocation6], 0
    %12 = vsyncpa [#allocation4], 0
    // Predicated region
    $region2: #{tpu_custom_call.1} parent=1 // pred_check
      _
    $region3: #{tpu_custom_call.1} parent=1 // pred_check_branch
      %14 = sbr.rel (0) target = $region5
    $region4: #{tpu_custom_call.1} parent=1 // pred_region
      %s16 = ssub.s32 256, 256
      %17 = vsyncadd [#allocation3], %s16
      %s18 = sshll.u32 [#allocation2], 4
      %s19 = int_to_ptr.vmem [resolvable:$true] %s18
      %24 = dma.hbm_to_vmem [thread:$0]  %s0, 256, %s19, [#allocation3], 128, 128, 8
    $region5: #{tpu_custom_call.1} parent=1 // pred_fallthru
      _
    // Predicated region
    $region6: #{tpu_custom_call.1} parent=1 // pred_check
      _
    $region7: #{tpu_custom_call.1} parent=1 // pred_check_branch
      %26 = sbr.rel (0) target = $region9
    $region8: #{tpu_custom_call.1} parent=1 // pred_region
      %s28 = ssub.s32 1024, 1024
      %29 = vsyncadd [#allocation6], %s28
      %s30 = sshll.u32 [#allocation5], 4
      %s31 = int_to_ptr.vmem [resolvable:$true] %s30
      %36 = dma.hbm_to_vmem [thread:$0]  %s1, 1024, %s31, [#allocation6], 64, 64, 4
    $region9: #{tpu_custom_call.1} parent=1 // pred_fallthru
      _
    // Predicated region
    $region10: #{tpu_custom_call.1} parent=1 // pred_check
      _
    $region11: #{tpu_custom_call.1} parent=1 // pred_check_branch
      %38 = sbr.rel (0) target = $region13
    $region12: #{tpu_custom_call.1} parent=1 // pred_region
      _
    $region13: #{tpu_custom_call.1} parent=1 // pred_fallthru
      _
    // Predicated region
    $region14: #{tpu_custom_call.1} parent=1 // pred_check
      _
    $region15: #{tpu_custom_call.1} parent=1 // pred_check_branch
      %40 = sbr.rel (0) target = $region17
    $region16: #{tpu_custom_call.1} parent=1 // pred_region
      %s42 = ssub.s32 1024, 1024
      %43 = vsyncadd [#allocation6], %s42
      %s44 = sshll.u32 [#allocation7], 4
      %s45 = int_to_ptr.vmem [resolvable:$true] %s44
      %50 = dma.hbm_to_vmem [thread:$0]  %s3, 1024, %s45, [#allocation6], 64, 64, 4
    $region17: #{tpu_custom_call.1} parent=1 // pred_fallthru
      _
    // Predicated region
    $region18: #{tpu_custom_call.1} parent=1 // pred_check
      _
    $region19: #{tpu_custom_call.1} parent=1 // pred_check_branch
      %52 = sbr.rel (0) target = $region21
    $region20: #{tpu_custom_call.1} parent=1 // pred_region
      _
    $region21: #{tpu_custom_call.1} parent=1 // pred_fallthru
      _
    // Predicated region
    $region22: #{tpu_custom_call.1} parent=1 // pred_check
      _
    $region23: #{tpu_custom_call.1} parent=1 // pred_check_branch
      %54 = sbr.rel (0) target = $region25
    $region24: #{tpu_custom_call.1} parent=1 // pred_region
      %55 = dma.done [#allocation3], 256
    $region25: #{tpu_custom_call.1} parent=1 // pred_fallthru
      _
    // Predicated region
    $region26: #{tpu_custom_call.1} parent=1 // pred_check
      _
    $region27: #{tpu_custom_call.1} parent=1 // pred_check_branch
      %57 = sbr.rel (0) target = $region29
    $region28: #{tpu_custom_call.1} parent=1 // pred_region
      %58 = dma.done [#allocation6], 1024
    $region29: #{tpu_custom_call.1} parent=1 // pred_fallthru
      _
    // Predicated region
    $region30: #{tpu_custom_call.1} parent=1 // pred_check
      _
    $region31: #{tpu_custom_call.1} parent=1 // pred_check_branch
      %60 = sbr.rel (0) target = $region33
    $region32: #{tpu_custom_call.1} parent=1 // pred_region
      %61 = dma.done [#allocation6], 1024
    $region33: #{tpu_custom_call.1} parent=1 // pred_fallthru
      _
    %v63 = vld [vmem:[#allocation2] sm:$0xff]
    %v64 = vld [vmem:[#allocation2 + $0x8] sm:$0xff]
    %v65 = vpack.c.bf16 %v64, %v63
    %v66 = vld [vmem:[#allocation5] sm:$0xf]
    %v67 = vld [vmem:[#allocation5 + $0x4] sm:$0xf]
    %v68 = vld [vmem:[#allocation5 + $0x8] sm:$0xf]
    %v69 = vld [vmem:[#allocation5 + $0xc] sm:$0xf]
    %v70 = vld [vmem:[#allocation5 + $0x10] sm:$0xf]
    %v71 = vld [vmem:[#allocation5 + $0x14] sm:$0xf]
    %v72 = vld [vmem:[#allocation5 + $0x18] sm:$0xf]
    %v73 = vld [vmem:[#allocation5 + $0x1c] sm:$0xf]
    %v74 = vld [vmem:[#allocation5 + $0x20] sm:$0xf]
    %v75 = vld [vmem:[#allocation5 + $0x24] sm:$0xf]
    %v76 = vld [vmem:[#allocation5 + $0x28] sm:$0xf]
    %v77 = vld [vmem:[#allocation5 + $0x2c] sm:$0xf]
    %v78 = vld [vmem:[#allocation5 + $0x30] sm:$0xf]
    %v79 = vld [vmem:[#allocation5 + $0x34] sm:$0xf]
    %v80 = vld [vmem:[#allocation5 + $0x38] sm:$0xf]
    %v81 = vld [vmem:[#allocation5 + $0x3c] sm:$0xf]
    %v82 = vld [vmem:[%s2] sm:$0x1]
    %v84 = vlaneseq
    %v85 = vshrl.u32 %v84, 7
    %v86 = vsub.s32 0, %v85
    %v87 = vrot.slane %v82, %v86
    %v105 = vunpack.c.l.b16 %v66
    %v106 = vunpack.c.l.b16 %v67
    %v107 = vunpack.c.l.b16 %v68
    %v108 = vunpack.c.l.b16 %v69
    %v109 = vunpack.c.l.b16 %v70
    %v110 = vunpack.c.l.b16 %v71
    %v111 = vunpack.c.l.b16 %v72
    %v112 = vunpack.c.l.b16 %v73
    %v113 = vunpack.c.l.b16 %v74
    %v114 = vunpack.c.l.b16 %v75
    %v115 = vunpack.c.l.b16 %v76
    %v116 = vunpack.c.l.b16 %v77
    %v117 = vunpack.c.l.b16 %v78
    %v118 = vunpack.c.l.b16 %v79
    %v119 = vunpack.c.l.b16 %v80
    %v120 = vunpack.c.l.b16 %v81
    %v121 = vpack.c.b16 %v106, %v105
    %v122 = vpack.c.b16 %v108, %v107
    %v123 = vpack.c.b16 %v110, %v109
    %v124 = vpack.c.b16 %v112, %v111
    %v125 = vpack.c.b16 %v114, %v113
    %v126 = vpack.c.b16 %v116, %v115
    %v127 = vpack.c.b16 %v118, %v117
    %v128 = vpack.c.b16 %v120, %v119
    %137 = vmatprep.subr.bf16.mxu0 0
    %138 = vmatpush1.bf16.msra.mxu0 %v121
    %139 = vmatprep.subr.bf16.mxu0 0
    %140 = vmatpush1.bf16.msra.mxu0 %v122
    %141 = vmatprep.subr.bf16.mxu0 0
    %142 = vmatpush1.bf16.msra.mxu0 %v123
    %143 = vmatprep.subr.bf16.mxu0 0
    %144 = vmatpush1.bf16.msra.mxu0 %v124
    %145 = vmatprep.subr.bf16.mxu0 0
    %146 = vmatpush1.bf16.msra.mxu0 %v125
    %147 = vmatprep.subr.bf16.mxu0 0
    %148 = vmatpush1.bf16.msra.mxu0 %v126
    %149 = vmatprep.subr.bf16.mxu0 0
    %150 = vmatpush1.bf16.msra.mxu0 %v127
    %151 = vmatprep.subr.bf16.mxu0 0
    %152 = vmatpush1.bf16.msra.mxu0 %v128
    %153 = vmatprep.subr.bf16.mxu0 0
    %154 = vmatpush1.bf16.msra.mxu0 0
    %155 = vmatprep.subr.bf16.mxu0 0
    %156 = vmatpush1.bf16.msra.mxu0 0
    %157 = vmatprep.subr.bf16.mxu0 0
    %158 = vmatpush1.bf16.msra.mxu0 0
    %159 = vmatprep.subr.bf16.mxu0 0
    %160 = vmatpush1.bf16.msra.mxu0 0
    %161 = vmatprep.subr.bf16.mxu0 0
    %162 = vmatpush1.bf16.msra.mxu0 0
    %163 = vmatprep.subr.bf16.mxu0 0
    %164 = vmatpush1.bf16.msra.mxu0 0
    %165 = vmatprep.subr.bf16.mxu0 0
    %166 = vmatpush1.bf16.msra.mxu0 0
    %167 = vmatprep.subr.bf16.mxu0 0
    %168 = vmatpush1.bf16.msra.mxu0 0
    %169 = vmatprep.mubr.bf16.mxu0 0
    %170 = vmatmul.mubr.bf16.gmra.mrb[0].mxu0 %v65
    %v171 = vpop.f32.mrb[0].mxu0
    %v172 = vadd.f32 %v87, %v171
    %v173 = vpop.f32.mrb[0].mxu0
    %v174 = vpop.f32.mrb[0].mxu0
    %v175 = vadd.f32 %v87, %v174
    %v176 = vpop.f32.mrb[0].mxu0
    %177 = vdwg.mxu0
    %v178 = vmax.f32 %v172, 0.0
    %v179 = vmax.f32 %v175, 0.0
    %v180 = vpack.c.bf16 %v179, %v178
    %v181 = vld [vmem:[#allocation7] sm:$0xf]
    %v182 = vld [vmem:[#allocation7 + $0x4] sm:$0xf]
    %v183 = vld [vmem:[#allocation7 + $0x8] sm:$0xf]
    %v184 = vld [vmem:[#allocation7 + $0xc] sm:$0xf]
    %v185 = vld [vmem:[#allocation7 + $0x10] sm:$0xf]
    %v186 = vld [vmem:[#allocation7 + $0x14] sm:$0xf]
    %v187 = vld [vmem:[#allocation7 + $0x18] sm:$0xf]
    %v188 = vld [vmem:[#allocation7 + $0x1c] sm:$0xf]
    %v189 = vld [vmem:[#allocation7 + $0x20] sm:$0xf]
    %v190 = vld [vmem:[#allocation7 + $0x24] sm:$0xf]
    %v191 = vld [vmem:[#allocation7 + $0x28] sm:$0xf]
    %v192 = vld [vmem:[#allocation7 + $0x2c] sm:$0xf]
    %v193 = vld [vmem:[#allocation7 + $0x30] sm:$0xf]
    %v194 = vld [vmem:[#allocation7 + $0x34] sm:$0xf]
    %v195 = vld [vmem:[#allocation7 + $0x38] sm:$0xf]
    %v196 = vld [vmem:[#allocation7 + $0x3c] sm:$0xf]
    %v197 = vld [vmem:[%s4] sm:$0x1]
    %v199 = vlaneseq
    %v200 = vshrl.u32 %v199, 7
    %v201 = vsub.s32 0, %v200
    %v202 = vrot.slane %v197, %v201
    %v220 = vunpack.c.l.b16 %v181
    %v221 = vunpack.c.l.b16 %v182
    %v222 = vunpack.c.l.b16 %v183
    %v223 = vunpack.c.l.b16 %v184
    %v224 = vunpack.c.l.b16 %v185
    %v225 = vunpack.c.l.b16 %v186
    %v226 = vunpack.c.l.b16 %v187
    %v227 = vunpack.c.l.b16 %v188
    %v228 = vunpack.c.l.b16 %v189
    %v229 = vunpack.c.l.b16 %v190
    %v230 = vunpack.c.l.b16 %v191
    %v231 = vunpack.c.l.b16 %v192
    %v232 = vunpack.c.l.b16 %v193
    %v233 = vunpack.c.l.b16 %v194
    %v234 = vunpack.c.l.b16 %v195
    %v235 = vunpack.c.l.b16 %v196
    %v236 = vpack.c.b16 %v221, %v220
    %v237 = vpack.c.b16 %v223, %v222
    %v238 = vpack.c.b16 %v225, %v224
    %v239 = vpack.c.b16 %v227, %v226
    %v240 = vpack.c.b16 %v229, %v228
    %v241 = vpack.c.b16 %v231, %v230
    %v242 = vpack.c.b16 %v233, %v232
    %v243 = vpack.c.b16 %v235, %v234
    %252 = vmatprep.subr.bf16.mxu0 0
    %253 = vmatpush1.bf16.msra.mxu0 %v236
    %254 = vmatprep.subr.bf16.mxu0 0
    %255 = vmatpush1.bf16.msra.mxu0 %v237
    %256 = vmatprep.subr.bf16.mxu0 0
    %257 = vmatpush1.bf16.msra.mxu0 %v238
    %258 = vmatprep.subr.bf16.mxu0 0
    %259 = vmatpush1.bf16.msra.mxu0 %v239
    %260 = vmatprep.subr.bf16.mxu0 0
    %261 = vmatpush1.bf16.msra.mxu0 %v240
    %262 = vmatprep.subr.bf16.mxu0 0
    %263 = vmatpush1.bf16.msra.mxu0 %v241
    %264 = vmatprep.subr.bf16.mxu0 0
    %265 = vmatpush1.bf16.msra.mxu0 %v242
    %266 = vmatprep.subr.bf16.mxu0 0
    %267 = vmatpush1.bf16.msra.mxu0 %v243
    %268 = vmatprep.subr.bf16.mxu0 0
    %269 = vmatpush1.bf16.msra.mxu0 0
    %270 = vmatprep.subr.bf16.mxu0 0
    %271 = vmatpush1.bf16.msra.mxu0 0
    %272 = vmatprep.subr.bf16.mxu0 0
    %273 = vmatpush1.bf16.msra.mxu0 0
    %274 = vmatprep.subr.bf16.mxu0 0
    %275 = vmatpush1.bf16.msra.mxu0 0
    %276 = vmatprep.subr.bf16.mxu0 0
    %277 = vmatpush1.bf16.msra.mxu0 0
    %278 = vmatprep.subr.bf16.mxu0 0
    %279 = vmatpush1.bf16.msra.mxu0 0
    %280 = vmatprep.subr.bf16.mxu0 0
    %281 = vmatpush1.bf16.msra.mxu0 0
    %282 = vmatprep.subr.bf16.mxu0 0
    %283 = vmatpush1.bf16.msra.mxu0 0
    %284 = vmatprep.mubr.bf16.mxu0 0
    %285 = vmatmul.mubr.bf16.gmra.mrb[0].mxu0 %v180
    %v286 = vpop.f32.mrb[0].mxu0
    %v287 = vadd.f32 %v202, %v286
    %v288 = vpop.f32.mrb[0].mxu0
    %v289 = vpop.f32.mrb[0].mxu0
    %v290 = vadd.f32 %v202, %v289
    %v291 = vpop.f32.mrb[0].mxu0
    %292 = vdwg.mxu0
    %293 = vst [vmem:[#allocation8] sm:$0xff] %v287
    %294 = vst [vmem:[#allocation8 + $0x8] sm:$0xff] %v290
    // Predicated region
    $region34: #{tpu_custom_call.1} parent=1 // pred_check
      _
    $region35: #{tpu_custom_call.1} parent=1 // pred_check_branch
      %296 = sbr.rel (0) target = $region37
    $region36: #{tpu_custom_call.1} parent=1 // pred_region
      %s298 = ssub.s32 256, 256
      %299 = vsyncadd [#allocation4], %s298
      %s300 = sshll.u32 [#allocation8], 4
      %s301 = int_to_ptr.vmem [resolvable:$true] %s300
      %306 = dma.vmem_to_hbm [thread:$0]  %s301, 256, %s5, [#allocation4], 128, 128, 8
    $region37: #{tpu_custom_call.1} parent=1 // pred_fallthru
      _
    // Predicated region
    $region38: #{tpu_custom_call.1} parent=1 // pred_check
      _
    $region39: #{tpu_custom_call.1} parent=1 // pred_check_branch
      %308 = sbr.rel (0) target = $region41
    $region40: #{tpu_custom_call.1} parent=1 // pred_region
      %309 = dma.done [#allocation4], 256
    $region41: #{tpu_custom_call.1} parent=1 // pred_fallthru
      _
    %310 = vsyncpa [#allocation3], 1
    %311 = vsyncpa [#allocation6], 1
    %312 = vsyncpa [#allocation4], 1

</llo_original>
